<compile_context>
chip_gen: v5e
topology: v5e:2x2
jax: 0.10.0
libtpu: 0.0.40
codegen_flags: <defaults>
</compile_context>

<pallas_src>
import jax
import jax.numpy as jnp
from jax.experimental import pallas as pl
from jax.experimental.pallas import tpu as pltpu


def _round_up(x, m):
    return (x + m - 1) // m * m


def mlp_attention_kernel(x_ref, wp_ref, bp_ref, wv_ref, o_ref):
    # x_ref : (B, TS, D) f32   -- one batch-major sequence tile
    # wp_ref: (D, A)     f32   -- proj_w.weight^T (resident)
    # bp_ref: (1, A)     f32   -- proj_w.bias     (resident)
    # wv_ref: (1, A)     f32   -- proj_v.weight   (resident)
    # o_ref : (TS, D)    f32
    B, TS, D = x_ref.shape

    # One fused MXU matmul over all batches: (B*TS, D) @ (D, A).
    # TS is a multiple of 8, so this reshape only merges leading dims
    # (layout-trivial, no relayout), and bias/wv broadcasts happen once.
    xf = x_ref[...].reshape(B * TS, D)
    h = jnp.tanh(
        jnp.dot(xf, wp_ref[...], preferred_element_type=jnp.float32) + bp_ref[...]
    )                                                            # (B*TS, A)
    # proj_v has a single output column: VPU multiply + lane reduce instead of
    # an MXU matmul with N=1.
    logits = jnp.sum(h * wv_ref[...], axis=-1, keepdims=True)    # (B*TS, 1)

    # Softmax over the batch axis (axis=1 of the original (S, B, 1) scores).
    # B is small and static; each batch is a contiguous static (TS, 1) slice.
    scores = [logits[b * TS:(b + 1) * TS] for b in range(B)]
    m = scores[0]
    for b in range(1, B):
        m = jnp.maximum(m, scores[b])
    es = [jnp.exp(s - m) for s in scores]
    denom = es[0]
    for b in range(1, B):
        denom = denom + es[b]
    inv = 1.0 / denom            # exact divide (approx reciprocal broke parity)

    # Weighted sum over the batch; index the pipelined input buffer directly.
    acc = x_ref[0] * (es[0] * inv)
    for b in range(1, B):
        acc = acc + x_ref[b] * (es[b] * inv)
    o_ref[...] = acc.astype(o_ref.dtype)


def _pick_seq_tile(S, B, D, A, vmem_budget_bytes=24 * 1024 * 1024):
    """Sequence-tile size: as large as the VMEM budget allows, cap 2048."""
    # f32 bytes resident per sequence row:
    #   x tile (double-buffered) + out tile (double-buffered) + h + acc + scores
    per_row = 4 * (2 * B * D + 2 * D + B * A + D + 4 * B)
    ts = vmem_budget_bytes // max(per_row, 1)
    ts = max(8, min(2048, (ts // 8) * 8))
    s8 = _round_up(S, 8)
    if s8 > 8:
        # Keep at least 2 grid programs so v7x megacore can split the
        # "parallel" sequence axis across both TensorCores.
        ts = min(ts, _round_up((s8 + 1) // 2, 8))
    return min(ts, s8)


@jax.jit
def mlp_attention_forward(x, proj_w_weight, proj_w_bias, proj_v_weight):
    """x: (S, B, D); proj_w_weight: (A, D); proj_w_bias: (A,); proj_v_weight: (1, A)."""
    S, B, D = x.shape
    A = proj_w_weight.shape[0]

    ts = _pick_seq_tile(S, B, D, A)
    s_pad = _round_up(S, ts)

    # Only layout plumbing left in the wrapper: a batch-major transpose of the
    # *un-padded* x (no D padding -> no HBM byte amplification).
    x_bt = jnp.transpose(x, (1, 0, 2)).astype(jnp.float32)          # (B, S, D)
    if s_pad != S:
        x_bt = jnp.pad(x_bt, ((0, 0), (0, s_pad - S), (0, 0)))      # (B, Sp, D)

    wp_t = proj_w_weight.astype(jnp.float32).T                       # (D, A)
    bp = proj_w_bias.astype(jnp.float32).reshape(1, A)               # (1, A)
    wv = proj_v_weight.astype(jnp.float32).reshape(1, A)             # (1, A)

    grid = (s_pad // ts,)

    cost = pl.CostEstimate(
        flops=int(2 * s_pad * B * D * A + 3 * s_pad * B * A
                  + 4 * s_pad * B * D + 6 * s_pad * B),
        transcendentals=int(s_pad * B * A + s_pad * B),
        bytes_accessed=int(4 * (s_pad * B * D + D * A + 2 * A + s_pad * D)),
    )

    out = pl.pallas_call(
        mlp_attention_kernel,
        out_shape=jax.ShapeDtypeStruct((s_pad, D), jnp.float32),
        grid=grid,
        in_specs=[
            pl.BlockSpec((B, ts, D), lambda i: (0, i, 0)),   # streamed x tiles
            pl.BlockSpec((D, A), lambda i: (0, 0)),          # resident weights
            pl.BlockSpec((1, A), lambda i: (0, 0)),
            pl.BlockSpec((1, A), lambda i: (0, 0)),
        ],
        out_specs=pl.BlockSpec((ts, D), lambda i: (i, 0)),
        compiler_params=pltpu.CompilerParams(
            dimension_semantics=("parallel",),
            vmem_limit_bytes=48 * 1024 * 1024,   # <= v7x 64 MiB physical per TC
        ),
        cost_estimate=cost,
    )(x_bt, wp_t, bp, wv)

    return out if s_pad == S else out[:S]


def mlp_attention_reference(x, proj_w_weight, proj_w_bias, proj_v_weight):
    hp = jax.lax.Precision.HIGHEST
    h = jnp.tanh(jnp.einsum("sbd,ad->sba", x, proj_w_weight, precision=hp)
                 + proj_w_bias)
    scores = jnp.einsum("sba,oa->sbo", h, proj_v_weight, precision=hp)  # (S, B, 1)
    p = jax.nn.softmax(scores, axis=1)
    return jnp.sum(x * p, axis=1)


if __name__ == "__main__":
    seq_len, batch_size, hidden_dim = 8, 2, 32
    attention_dim = hidden_dim  # module default when attention_dim is None

    key = jax.random.PRNGKey(0)
    k_x, k_wp, k_bp, k_wv = jax.random.split(key, 4)

    # PyTorch-style uniform(-1/sqrt(fan_in), 1/sqrt(fan_in)) init.
    bound_p = 1.0 / (hidden_dim ** 0.5)
    bound_v = 1.0 / (attention_dim ** 0.5)
    proj_w_weight = jax.random.uniform(
        k_wp, (attention_dim, hidden_dim), jnp.float32, -bound_p, bound_p)
    proj_w_bias = jax.random.uniform(
        k_bp, (attention_dim,), jnp.float32, -bound_p, bound_p)
    proj_v_weight = jax.random.uniform(
        k_wv, (1, attention_dim), jnp.float32, -bound_v, bound_v)

    x = jax.random.normal(k_x, (seq_len, batch_size, hidden_dim), jnp.float32)

    out = jax.block_until_ready(
        mlp_attention_forward(x, proj_w_weight, proj_w_bias, proj_v_weight))
    ref = mlp_attention_reference(x, proj_w_weight, proj_w_bias, proj_v_weight)

    assert out.shape == (seq_len, hidden_dim)
    assert jnp.allclose(out, ref, atol=2e-3, rtol=2e-3), "mismatch vs reference"

    print("KERNEL_OK")
</pallas_src>

<mosaic_0001>
module attributes {stable_mosaic.version = 11 : i64} {
  func.func @mlp_attention_kernel(%arg0: i32, %arg1: memref<2x8x32xf32, #tpu.memory_space<vmem>>, %arg2: memref<32x32xf32, #tpu.memory_space<vmem>>, %arg3: memref<1x32xf32, #tpu.memory_space<vmem>>, %arg4: memref<1x32xf32, #tpu.memory_space<vmem>>, %arg5: memref<8x32xf32, #tpu.memory_space<vmem>>) attributes {dimension_semantics = [#tpu.dimension_semantics<parallel>], iteration_bounds = array<i64: 1>, scalar_prefetch = 0 : i64, scratch_operands = 0 : i64, tpu.core_type = #tpu.core_type<tc>, window_params = [{transform_indices = @transform_0, window_bounds = array<i64: 2, 8, 32>}, {pipeline_mode = #tpu.pipeline_mode<synchronous>, transform_indices = @transform_1, window_bounds = array<i64: 32, 32>}, {pipeline_mode = #tpu.pipeline_mode<synchronous>, transform_indices = @transform_2, window_bounds = array<i64: 1, 32>}, {pipeline_mode = #tpu.pipeline_mode<synchronous>, transform_indices = @transform_3, window_bounds = array<i64: 1, 32>}, {transform_indices = @transform_4, window_bounds = array<i64: 8, 32>}]} {
    %c0 = arith.constant 0 : index
    %c0_0 = arith.constant 0 : index
    %c0_1 = arith.constant 0 : index
    %0 = vector.load %arg1[%c0, %c0_0, %c0_1] : memref<2x8x32xf32, #tpu.memory_space<vmem>>, vector<2x8x32xf32>
    %1 = vector.shape_cast %0 : vector<2x8x32xf32> to vector<16x32xf32>
    %c0_2 = arith.constant 0 : index
    %c0_3 = arith.constant 0 : index
    %2 = vector.load %arg2[%c0_2, %c0_3] : memref<32x32xf32, #tpu.memory_space<vmem>>, vector<32x32xf32>
    %cst = arith.constant dense<0.000000e+00> : vector<16x32xf32>
    %3 = tpu.matmul %1, %2, %cst {dimension_numbers = #tpu.dot_dimension_numbers<[1], [0], [0], [1], [0, 0, 1, 1], [], []>} : vector<16x32xf32>, vector<32x32xf32>, vector<16x32xf32> -> vector<16x32xf32>
    %c0_4 = arith.constant 0 : index
    %c0_5 = arith.constant 0 : index
    %4 = vector.load %arg3[%c0_4, %c0_5] : memref<1x32xf32, #tpu.memory_space<vmem>>, vector<1x32xf32>
    %5 = vector.broadcast %4 : vector<1x32xf32> to vector<16x32xf32>
    %6 = arith.addf %3, %5 : vector<16x32xf32>
    %7 = math.tanh %6 : vector<16x32xf32>
    %c0_6 = arith.constant 0 : index
    %c0_7 = arith.constant 0 : index
    %8 = vector.load %arg4[%c0_6, %c0_7] : memref<1x32xf32, #tpu.memory_space<vmem>>, vector<1x32xf32>
    %9 = vector.broadcast %8 : vector<1x32xf32> to vector<16x32xf32>
    %10 = arith.mulf %7, %9 : vector<16x32xf32>
    %cst_8 = arith.constant dense<0.000000e+00> : vector<16xf32>
    %11 = vector.multi_reduction <add>, %10, %cst_8 [1] : vector<16x32xf32> to vector<16xf32>
    %12 = vector.shape_cast %11 : vector<16xf32> to vector<16x1xf32>
    %13 = vector.extract_strided_slice %12 {offsets = [0, 0], sizes = [8, 1], strides = [1, 1]} : vector<16x1xf32> to vector<8x1xf32>
    %14 = vector.extract_strided_slice %12 {offsets = [8, 0], sizes = [8, 1], strides = [1, 1]} : vector<16x1xf32> to vector<8x1xf32>
    %15 = arith.maximumf %13, %14 : vector<8x1xf32>
    %16 = arith.subf %13, %15 : vector<8x1xf32>
    %17 = math.exp %16 : vector<8x1xf32>
    %18 = arith.subf %14, %15 : vector<8x1xf32>
    %19 = math.exp %18 : vector<8x1xf32>
    %20 = arith.addf %17, %19 : vector<8x1xf32>
    %cst_9 = arith.constant 1.000000e+00 : f32
    %21 = vector.broadcast %cst_9 : f32 to vector<8x1xf32>
    %22 = arith.divf %21, %20 : vector<8x1xf32>
    %c0_10 = arith.constant 0 : index
    %c0_11 = arith.constant 0 : index
    %c0_12 = arith.constant 0 : index
    %23 = vector.load %arg1[%c0_10, %c0_11, %c0_12] : memref<2x8x32xf32, #tpu.memory_space<vmem>>, vector<1x8x32xf32>
    %24 = vector.shape_cast %23 : vector<1x8x32xf32> to vector<8x32xf32>
    %25 = arith.mulf %17, %22 : vector<8x1xf32>
    %26 = vector.broadcast %25 : vector<8x1xf32> to vector<8x32xf32>
    %27 = arith.mulf %24, %26 : vector<8x32xf32>
    %c1 = arith.constant 1 : index
    %c0_13 = arith.constant 0 : index
    %c0_14 = arith.constant 0 : index
    %28 = vector.load %arg1[%c1, %c0_13, %c0_14] : memref<2x8x32xf32, #tpu.memory_space<vmem>>, vector<1x8x32xf32>
    %29 = vector.shape_cast %28 : vector<1x8x32xf32> to vector<8x32xf32>
    %30 = arith.mulf %19, %22 : vector<8x1xf32>
    %31 = vector.broadcast %30 : vector<8x1xf32> to vector<8x32xf32>
    %32 = arith.mulf %29, %31 : vector<8x32xf32>
    %33 = arith.addf %27, %32 : vector<8x32xf32>
    %c0_15 = arith.constant 0 : index
    %c0_16 = arith.constant 0 : index
    %34 = vector.load %arg5[%c0_15, %c0_16] : memref<8x32xf32, #tpu.memory_space<vmem>>, vector<8x32xf32>
    tpu.vector_store %arg5[%c0_15, %c0_16], %33 {strides = array<i32>} : memref<8x32xf32, #tpu.memory_space<vmem>>, vector<8x32xf32>,
    return
  }
  func.func @transform_0(%arg0: i32) -> (i32, i32, i32) {
    %c0_i32 = arith.constant 0 : i32
    %c0_i32_0 = arith.constant 0 : i32
    %c0_i32_1 = arith.constant 0 : i32
    return %c0_i32, %arg0, %c0_i32_0 : i32, i32, i32
  }
  func.func @transform_1(%arg0: i32) -> (i32, i32) {
    %c0_i32 = arith.constant 0 : i32
    %c0_i32_0 = arith.constant 0 : i32
    %c0_i32_1 = arith.constant 0 : i32
    return %c0_i32, %c0_i32_0 : i32, i32
  }
  func.func @transform_2(%arg0: i32) -> (i32, i32) {
    %c0_i32 = arith.constant 0 : i32
    %c0_i32_0 = arith.constant 0 : i32
    %c0_i32_1 = arith.constant 0 : i32
    return %c0_i32, %c0_i32_0 : i32, i32
  }
  func.func @transform_3(%arg0: i32) -> (i32, i32) {
    %c0_i32 = arith.constant 0 : i32
    %c0_i32_0 = arith.constant 0 : i32
    %c0_i32_1 = arith.constant 0 : i32
    return %c0_i32, %c0_i32_0 : i32, i32
  }
  func.func @transform_4(%arg0: i32) -> (i32, i32) {
    %c0_i32 = arith.constant 0 : i32
    %c0_i32_0 = arith.constant 0 : i32
    return %arg0, %c0_i32 : i32, i32
  }
}

</mosaic_0001>

<llo_original>
// kernel: mlp_attention_forward.1
$region0: #{mlp_attention_forward.1}
  #allocation0 [shape = 'u32[]', space=smem, size = 0x4, offset = 0x4, fixed_abs, tag = 'smem constant byte address 0x4 - core index']
  #allocation1 [shape = 'u32[72,128]{1,0:T(1,128)}', space=vmem, size = 0x9000, scoped, tag = 'internal scratch']
  %s0 = inlined_call_operand.vmem [shape: f32[2,8,32], index: 0, kind: input, shape index: {}]
  %s1 = inlined_call_operand.vmem [shape: f32[32,32], index: 1, kind: input, shape index: {}]
  %s2 = inlined_call_operand.vmem [shape: f32[1,32], index: 2, kind: input, shape index: {}]
  %s3 = inlined_call_operand.vmem [shape: f32[1,32], index: 3, kind: input, shape index: {}]
  %s4 = inlined_call_operand.hbm [shape: f32[8,32], index: 4, kind: output, shape index: {}]
  %s5 = sld [smem:[#allocation0]]
  $region26: #{mlp_attention_forward.1} parent=0
    _
  %s7 = ssub.s32 1, %s5
  %s8 = scalar_select 0, %s7, %s5
  $region1: #{mlp_attention_forward.1} parent=0
    #allocation2 [shape = 'u8[4096]{0}', space=vmem, size = 0x1000, scoped, tag = 'output window, operand 0, single buffered']
    #allocation3 [shape = 's32[1]{0}', space=sflag, size = 0x4, scoped, tag = 'scoped memory for mlp_attention_forward.1']
    %9 = vsyncpa [#allocation3], 0
    // Predicated region
    $region2: #{mlp_attention_forward.1} parent=1 // pred_check
      _
    $region3: #{mlp_attention_forward.1} parent=1 // pred_check_branch
      %11 = sbr.rel (0) target = $region5
    $region4: #{mlp_attention_forward.1} parent=1 // pred_region
      _
    $region5: #{mlp_attention_forward.1} parent=1 // pred_fallthru
      _
    // Predicated region
    $region6: #{mlp_attention_forward.1} parent=1 // pred_check
      _
    $region7: #{mlp_attention_forward.1} parent=1 // pred_check_branch
      %13 = sbr.rel (0) target = $region9
    $region8: #{mlp_attention_forward.1} parent=1 // pred_region
      _
    $region9: #{mlp_attention_forward.1} parent=1 // pred_fallthru
      _
    // Predicated region
    $region10: #{mlp_attention_forward.1} parent=1 // pred_check
      _
    $region11: #{mlp_attention_forward.1} parent=1 // pred_check_branch
      %15 = sbr.rel (0) target = $region13
    $region12: #{mlp_attention_forward.1} parent=1 // pred_region
      _
    $region13: #{mlp_attention_forward.1} parent=1 // pred_fallthru
      _
    // Predicated region
    $region14: #{mlp_attention_forward.1} parent=1 // pred_check
      _
    $region15: #{mlp_attention_forward.1} parent=1 // pred_check_branch
      %17 = sbr.rel (0) target = $region17
    $region16: #{mlp_attention_forward.1} parent=1 // pred_region
      _
    $region17: #{mlp_attention_forward.1} parent=1 // pred_fallthru
      _
    %v18 = vld [vmem:[%s0] sm:$0xff]
    %v19 = vld [vmem:[%s0 + $0x8] sm:$0xff]
    %v20 = vld [vmem:[%s1] sm:$0xff]
    %v21 = vld [vmem:[%s1 + $0x8] sm:$0xff]
    %v22 = vld [vmem:[%s1 + $0x10] sm:$0xff]
    %v23 = vld [vmem:[%s1 + $0x18] sm:$0xff]
    %v24 = vld [vmem:[%s2] sm:$0x1]
    %v26 = vperm.slane %v24, 0
    %vm28 = vcmask 261120
    %v30 = vsel %vm28, %v18, 0
    %v33 = vsel %vm28, %v19, 0
    %35 = vmatpush.msra.mxu0 0.0
    %36 = vmatpush.msra.mxu0 0.0
    %37 = vmatpush.msra.mxu0 0.0
    %38 = vmatpush.msra.mxu0 0.0
    %39 = vmatpush.msra.mxu0 0.0
    %40 = vmatpush.msra.mxu0 0.0
    %41 = vmatpush.msra.mxu0 0.0
    %42 = vmatpush.msra.mxu0 0.0
    %43 = vmatpush.msra.mxu0 0.0
    %44 = vmatpush.msra.mxu0 0.0
    %45 = vmatpush.msra.mxu0 0.0
    %46 = vmatpush.msra.mxu0 0.0
    %47 = vmatpush.msra.mxu0 %v23
    %48 = vmatpush.msra.mxu0 %v22
    %49 = vmatpush.msra.mxu0 %v21
    %50 = vmatpush.msra.mxu0 %v20
    %51 = vmatmul.f32.gmra.mxu0 %v30
    %v52 = vpop.f32.mrf.mxu0
    %v53 = vadd.f32 %v26, %v52
    %54 = vmatmul.f32.gmra.mxu0 %v33
    %v55 = vpop.f32.mrf.mxu0
    %v56 = vadd.f32 %v26, %v55
    %57 = vdwg.mxu0
    %v58 = vtanh.pop %v53
    %v59 = vtanh.pop %v56
    %v60 = vld [vmem:[%s3] sm:$0x1]
    %v62 = vperm.slane %v60, 0
    %v64 = vmul.f32 %v58, %v62
    %v65 = vmul.f32 %v59, %v62
    %v66 = vsel %vm28, %v64, 0.0
    %67 = vadd.xlane.f32.xlu0 %v66
    %v68 = vpop.xlane.xlu0 %67
    %v69 = vsel %vm28, %v65, 0.0
    %70 = vadd.xlane.f32.xlu0 %v69
    %v71 = vpop.xlane.xlu0 %70
    %v72 = vmax.f32 %v68, %v71
    %v73 = vsub.f32 %v68, %v72
    %v74 = vmul.f32 %v73, 1.442695
    %v75 = vpow.pop %v74
    %v76 = vsub.f32 %v71, %v72
    %v77 = vmul.f32 %v76, 1.442695
    %v78 = vpow.pop %v77
    %v79 = vadd.f32 %v75, %v78
    %v80 = vrcp.pop %v79
    %v81 = vmul.f32 %v79, %v80
    %v82 = vsub.f32 1.0, %v81
    %v83 = vmul.f32 %v80, %v82
    %v84 = vadd.f32 %v80, %v83
    %vm85 = vweird.f32 %v79
    %vm86 = vweird.f32 %v80
    %vm87 = vmor %vm85, %vm86
    %v88 = vsel %vm87, %v80, %v84
    %v89 = vand.u32 2147483647, %v79
    %vm90 = vcmp.eq.f32.partialorder %v89, 8.507059e+37
    %v91 = vand.u32 %v79, 2147483648
    %v92 = vor.u32 1.1754944e-38, %v91
    %v93 = vsel %vm90, %v92, %v88
    %v94 = vmul.f32 1.0, %v93
    %v95 = vld [vmem:[%s0] sm:$0xff]
    %v96 = vmul.f32 %v75, %v94
    %v97 = vmul.f32 %v95, %v96
    %s98 = scalar_lea.vmem %s0, 8
    %v99 = vld [vmem:[%s98] sm:$0xff]
    %v100 = vmul.f32 %v78, %v94
    %v101 = vmul.f32 %v99, %v100
    %v102 = vadd.f32 %v97, %v101
    %103 = vst.msk [vmem:[#allocation2] sm:$0xff] %vm28, %v102
    // Predicated region
    $region18: #{mlp_attention_forward.1} parent=1 // pred_check
      _
    $region19: #{mlp_attention_forward.1} parent=1 // pred_check_branch
      %105 = sbr.rel (0) target = $region21
    $region20: #{mlp_attention_forward.1} parent=1 // pred_region
      %107 = vsyncadd [#allocation3], 0
      %s109 = sshll.u32 [#allocation2], 4
      %s110 = int_to_ptr.vmem [resolvable:$true] %s109
      %s111 = sshll.u32 %s4, 4
      %s112 = int_to_ptr.hbm [resolvable:$true] %s111
      %114 = dma.vmem_to_hbm [thread:$0]  %s110, 128, %s112, [#allocation3]
    $region21: #{mlp_attention_forward.1} parent=1 // pred_fallthru
      _
    // Predicated region
    $region22: #{mlp_attention_forward.1} parent=1 // pred_check
      _
    $region23: #{mlp_attention_forward.1} parent=1 // pred_check_branch
      %116 = sbr.rel (0) target = $region25
    $region24: #{mlp_attention_forward.1} parent=1 // pred_region
      %118 = dma.done [#allocation3], 128
    $region25: #{mlp_attention_forward.1} parent=1 // pred_fallthru
      _
    %119 = vsyncpa [#allocation3], 1

</llo_original>
